<compile_context>
chip_gen: v5e
topology: v5e:2x2
jax: 0.10.0
libtpu: 0.0.40
codegen_flags: <defaults>
</compile_context>

<pallas_src>
import jax
import jax.numpy as jnp
from jax.experimental import pallas as pl
from jax.experimental.pallas import tpu as pltpu

IN_DIM = 28 * 28   # 784
H1 = 128
H2 = 256
OUT_DIM = 10
OUT_PAD = 128      # lane-dense output slab; real logits live in [:, :OUT_DIM]
MAX_TILE_B = 1024  # biggest batch tile (multiple of 128) that comfortably fits scoped VMEM


def _round_up(n, m):
    return ((n + m - 1) // m) * m


def mlp_kernel(x_ref, w1_ref, b1_ref, w2_ref, b2_ref, w3_ref, b3_ref, o_ref):
    # Fully fused forward for one batch tile: (matmul + bias + relu) x 2 -> matmul + bias.
    # bf16 MXU operands, f32 accumulation, f32 lane-dense output slab.
    x = x_ref[...].astype(jnp.bfloat16)   # mirrors torch's x.float(), fed to the MXU as bf16
    h1 = jnp.dot(x, w1_ref[...], preferred_element_type=jnp.float32) + b1_ref[...]
    h1 = jnp.maximum(h1, 0.0).astype(jnp.bfloat16)
    h2 = jnp.dot(h1, w2_ref[...], preferred_element_type=jnp.float32) + b2_ref[...]
    h2 = jnp.maximum(h2, 0.0).astype(jnp.bfloat16)
    out = jnp.dot(h2, w3_ref[...], preferred_element_type=jnp.float32) + b3_ref[...]
    o_ref[...] = out.astype(o_ref.dtype)


def init_params(key):
    # Deterministic init mimicking torch.nn.Linear default: U(-1/sqrt(fan_in), 1/sqrt(fan_in)).
    # Weights stored as (in_features, out_features) so the kernel computes x @ W + b
    # (equivalent to PyTorch's x @ W.T + b with W of shape (out, in)).
    def linear(key, fan_in, fan_out):
        kw, kb = jax.random.split(key)
        bound = 1.0 / jnp.sqrt(fan_in)
        w = jax.random.uniform(kw, (fan_in, fan_out), jnp.float32, -bound, bound)
        b = jax.random.uniform(kb, (1, fan_out), jnp.float32, -bound, bound)
        return w, b

    k1, k2, k3 = jax.random.split(key, 3)
    w1, b1 = linear(k1, IN_DIM, H1)
    w2, b2 = linear(k2, H1, H2)
    w3, b3 = linear(k3, H2, OUT_DIM)
    return (w1, b1, w2, b2, w3, b3)


def pack_params(params):
    """One-time conversion to the kernel layout: bf16 weights, f32 biases,
    layer-3 columns zero-padded from OUT_DIM to OUT_PAD lanes."""
    w1, b1, w2, b2, w3, b3 = params
    w1p = w1.astype(jnp.bfloat16)
    w2p = w2.astype(jnp.bfloat16)
    w3p = jnp.zeros((H2, OUT_PAD), jnp.bfloat16).at[:, :OUT_DIM].set(w3.astype(jnp.bfloat16))
    b3p = jnp.zeros((1, OUT_PAD), jnp.float32).at[:, :OUT_DIM].set(b3.astype(jnp.float32))
    return (w1p, b1.astype(jnp.float32), w2p, b2.astype(jnp.float32), w3p, b3p)


def mnist_classifier_forward(x, packed_params, tile_b=None):
    w1, b1, w2, b2, w3, b3 = packed_params
    B = x.shape[0]
    if tile_b is None:
        # Multiple of 128 for a full MXU M-face; capped at MAX_TILE_B so double-buffered
        # x tiles + resident bf16 weights fit the default scoped VMEM on v5e/v6e/v7x.
        tile_b = min(MAX_TILE_B, _round_up(max(B, 1), 128))
    b_padded = _round_up(B, tile_b)

    xf = x.astype(jnp.float32)
    if b_padded != B:
        xf = jnp.pad(xf, ((0, b_padded - B), (0, 0)))  # keep every tile full-size / aligned

    grid = (b_padded // tile_b,)

    flops = 2 * b_padded * (IN_DIM * H1 + H1 * H2 + H2 * OUT_PAD)
    bytes_accessed = (
        b_padded * IN_DIM * 4 + b_padded * OUT_PAD * 4          # x in, logits out (f32)
        + (w1.size + w2.size + w3.size) * 2                      # bf16 weights
        + (b1.size + b2.size + b3.size) * 4                      # f32 biases
    )

    out_padded = pl.pallas_call(
        mlp_kernel,
        out_shape=jax.ShapeDtypeStruct((b_padded, OUT_PAD), jnp.float32),
        grid=grid,
        in_specs=[
            pl.BlockSpec((tile_b, IN_DIM), lambda i: (i, 0)),   # x: streamed tile per grid step
            pl.BlockSpec((IN_DIM, H1), lambda i: (0, 0)),       # w1: resident
            pl.BlockSpec((1, H1), lambda i: (0, 0)),            # b1: resident
            pl.BlockSpec((H1, H2), lambda i: (0, 0)),           # w2: resident
            pl.BlockSpec((1, H2), lambda i: (0, 0)),            # b2: resident
            pl.BlockSpec((H2, OUT_PAD), lambda i: (0, 0)),      # w3 (padded): resident
            pl.BlockSpec((1, OUT_PAD), lambda i: (0, 0)),       # b3 (padded): resident
        ],
        out_specs=pl.BlockSpec((tile_b, OUT_PAD), lambda i: (i, 0)),
        compiler_params=pltpu.CompilerParams(
            dimension_semantics=("parallel",)),
        cost_estimate=pl.CostEstimate(
            flops=flops, transcendentals=0, bytes_accessed=bytes_accessed),
    )(xf, w1, b1, w2, b2, w3, b3)

    return out_padded[:B, :OUT_DIM]


def reference_forward(x, params):
    # Pure-JAX f32 reference matching the PyTorch module semantics.
    w1, b1, w2, b2, w3, b3 = params
    h1 = jnp.maximum(x.astype(jnp.float32) @ w1 + b1, 0.0)
    h2 = jnp.maximum(h1 @ w2 + b2, 0.0)
    return h2 @ w3 + b3


if __name__ == "__main__":
    key = jax.random.PRNGKey(0)
    kparams, kx = jax.random.split(key)
    params = init_params(kparams)
    packed = pack_params(params)

    B = 8  # small batch; wrapper pads to one 128-row tile
    x = jax.random.normal(kx, (B, IN_DIM), dtype=jnp.float32)

    fwd = jax.jit(mnist_classifier_forward)
    out = jax.block_until_ready(fwd(x, packed))

    ref = reference_forward(x, params)
    assert out.shape == (B, OUT_DIM)
    # bf16 operands with f32 accumulation -> loosened tolerance vs. full-f32 reference.
    assert jnp.allclose(out, ref, atol=5e-2, rtol=5e-2), "mismatch vs JAX reference"

    print("KERNEL_OK")
</pallas_src>

<mosaic_0001>
module attributes {stable_mosaic.version = 11 : i64} {
  func.func @mlp_kernel(%arg0: i32, %arg1: memref<128x784xf32, #tpu.memory_space<vmem>>, %arg2: memref<784x128xbf16, #tpu.memory_space<vmem>>, %arg3: memref<1x128xf32, #tpu.memory_space<vmem>>, %arg4: memref<128x256xbf16, #tpu.memory_space<vmem>>, %arg5: memref<1x256xf32, #tpu.memory_space<vmem>>, %arg6: memref<256x128xbf16, #tpu.memory_space<vmem>>, %arg7: memref<1x128xf32, #tpu.memory_space<vmem>>, %arg8: memref<128x128xf32, #tpu.memory_space<vmem>>) attributes {dimension_semantics = [#tpu.dimension_semantics<parallel>], iteration_bounds = array<i64: 1>, scalar_prefetch = 0 : i64, scratch_operands = 0 : i64, tpu.core_type = #tpu.core_type<tc>, window_params = [{transform_indices = @transform_0, window_bounds = array<i64: 128, 784>}, {pipeline_mode = #tpu.pipeline_mode<synchronous>, transform_indices = @transform_1, window_bounds = array<i64: 784, 128>}, {pipeline_mode = #tpu.pipeline_mode<synchronous>, transform_indices = @transform_2, window_bounds = array<i64: 1, 128>}, {pipeline_mode = #tpu.pipeline_mode<synchronous>, transform_indices = @transform_3, window_bounds = array<i64: 128, 256>}, {pipeline_mode = #tpu.pipeline_mode<synchronous>, transform_indices = @transform_4, window_bounds = array<i64: 1, 256>}, {pipeline_mode = #tpu.pipeline_mode<synchronous>, transform_indices = @transform_5, window_bounds = array<i64: 256, 128>}, {pipeline_mode = #tpu.pipeline_mode<synchronous>, transform_indices = @transform_6, window_bounds = array<i64: 1, 128>}, {transform_indices = @transform_7, window_bounds = array<i64: 128, 128>}]} {
    %c0 = arith.constant 0 : index
    %c0_0 = arith.constant 0 : index
    %0 = vector.load %arg1[%c0, %c0_0] : memref<128x784xf32, #tpu.memory_space<vmem>>, vector<128x784xf32>
    %1 = arith.truncf %0 : vector<128x784xf32> to vector<128x784xbf16>
    %c0_1 = arith.constant 0 : index
    %c0_2 = arith.constant 0 : index
    %2 = vector.load %arg2[%c0_1, %c0_2] : memref<784x128xbf16, #tpu.memory_space<vmem>>, vector<784x128xbf16>
    %cst = arith.constant dense<0.000000e+00> : vector<128x128xf32>
    %3 = tpu.matmul %1, %2, %cst {dimension_numbers = #tpu.dot_dimension_numbers<[1], [0], [0], [1], [0, 0, 1, 1], [], []>} : vector<128x784xbf16>, vector<784x128xbf16>, vector<128x128xf32> -> vector<128x128xf32>
    %c0_3 = arith.constant 0 : index
    %c0_4 = arith.constant 0 : index
    %4 = vector.load %arg3[%c0_3, %c0_4] : memref<1x128xf32, #tpu.memory_space<vmem>>, vector<1x128xf32>
    %5 = vector.broadcast %4 : vector<1x128xf32> to vector<128x128xf32>
    %6 = arith.addf %3, %5 : vector<128x128xf32>
    %cst_5 = arith.constant 0.000000e+00 : f32
    %7 = vector.broadcast %cst_5 : f32 to vector<128x128xf32>
    %8 = arith.maximumf %6, %7 : vector<128x128xf32>
    %9 = arith.truncf %8 : vector<128x128xf32> to vector<128x128xbf16>
    %c0_6 = arith.constant 0 : index
    %c0_7 = arith.constant 0 : index
    %10 = vector.load %arg4[%c0_6, %c0_7] : memref<128x256xbf16, #tpu.memory_space<vmem>>, vector<128x256xbf16>
    %cst_8 = arith.constant dense<0.000000e+00> : vector<128x256xf32>
    %11 = tpu.matmul %9, %10, %cst_8 {dimension_numbers = #tpu.dot_dimension_numbers<[1], [0], [0], [1], [0, 0, 1, 1], [], []>} : vector<128x128xbf16>, vector<128x256xbf16>, vector<128x256xf32> -> vector<128x256xf32>
    %c0_9 = arith.constant 0 : index
    %c0_10 = arith.constant 0 : index
    %12 = vector.load %arg5[%c0_9, %c0_10] : memref<1x256xf32, #tpu.memory_space<vmem>>, vector<1x256xf32>
    %13 = vector.broadcast %12 : vector<1x256xf32> to vector<128x256xf32>
    %14 = arith.addf %11, %13 : vector<128x256xf32>
    %cst_11 = arith.constant 0.000000e+00 : f32
    %15 = vector.broadcast %cst_11 : f32 to vector<128x256xf32>
    %16 = arith.maximumf %14, %15 : vector<128x256xf32>
    %17 = arith.truncf %16 : vector<128x256xf32> to vector<128x256xbf16>
    %c0_12 = arith.constant 0 : index
    %c0_13 = arith.constant 0 : index
    %18 = vector.load %arg6[%c0_12, %c0_13] : memref<256x128xbf16, #tpu.memory_space<vmem>>, vector<256x128xbf16>
    %cst_14 = arith.constant dense<0.000000e+00> : vector<128x128xf32>
    %19 = tpu.matmul %17, %18, %cst_14 {dimension_numbers = #tpu.dot_dimension_numbers<[1], [0], [0], [1], [0, 0, 1, 1], [], []>} : vector<128x256xbf16>, vector<256x128xbf16>, vector<128x128xf32> -> vector<128x128xf32>
    %c0_15 = arith.constant 0 : index
    %c0_16 = arith.constant 0 : index
    %20 = vector.load %arg7[%c0_15, %c0_16] : memref<1x128xf32, #tpu.memory_space<vmem>>, vector<1x128xf32>
    %21 = vector.broadcast %20 : vector<1x128xf32> to vector<128x128xf32>
    %22 = arith.addf %19, %21 : vector<128x128xf32>
    %c0_17 = arith.constant 0 : index
    %c0_18 = arith.constant 0 : index
    %23 = vector.load %arg8[%c0_17, %c0_18] : memref<128x128xf32, #tpu.memory_space<vmem>>, vector<128x128xf32>
    tpu.vector_store %arg8[%c0_17, %c0_18], %22 {strides = array<i32>} : memref<128x128xf32, #tpu.memory_space<vmem>>, vector<128x128xf32>,
    return
  }
  func.func @transform_0(%arg0: i32) -> (i32, i32) {
    %c0_i32 = arith.constant 0 : i32
    %c0_i32_0 = arith.constant 0 : i32
    return %arg0, %c0_i32 : i32, i32
  }
  func.func @transform_1(%arg0: i32) -> (i32, i32) {
    %c0_i32 = arith.constant 0 : i32
    %c0_i32_0 = arith.constant 0 : i32
    %c0_i32_1 = arith.constant 0 : i32
    return %c0_i32, %c0_i32_0 : i32, i32
  }
  func.func @transform_2(%arg0: i32) -> (i32, i32) {
    %c0_i32 = arith.constant 0 : i32
    %c0_i32_0 = arith.constant 0 : i32
    %c0_i32_1 = arith.constant 0 : i32
    return %c0_i32, %c0_i32_0 : i32, i32
  }
  func.func @transform_3(%arg0: i32) -> (i32, i32) {
    %c0_i32 = arith.constant 0 : i32
    %c0_i32_0 = arith.constant 0 : i32
    %c0_i32_1 = arith.constant 0 : i32
    return %c0_i32, %c0_i32_0 : i32, i32
  }
  func.func @transform_4(%arg0: i32) -> (i32, i32) {
    %c0_i32 = arith.constant 0 : i32
    %c0_i32_0 = arith.constant 0 : i32
    %c0_i32_1 = arith.constant 0 : i32
    return %c0_i32, %c0_i32_0 : i32, i32
  }
  func.func @transform_5(%arg0: i32) -> (i32, i32) {
    %c0_i32 = arith.constant 0 : i32
    %c0_i32_0 = arith.constant 0 : i32
    %c0_i32_1 = arith.constant 0 : i32
    return %c0_i32, %c0_i32_0 : i32, i32
  }
  func.func @transform_6(%arg0: i32) -> (i32, i32) {
    %c0_i32 = arith.constant 0 : i32
    %c0_i32_0 = arith.constant 0 : i32
    %c0_i32_1 = arith.constant 0 : i32
    return %c0_i32, %c0_i32_0 : i32, i32
  }
  func.func @transform_7(%arg0: i32) -> (i32, i32) {
    %c0_i32 = arith.constant 0 : i32
    %c0_i32_0 = arith.constant 0 : i32
    return %arg0, %c0_i32 : i32, i32
  }
}

</mosaic_0001>

<llo_original>
// kernel: mnist_classifier_forward.1
$region0: #{mnist_classifier_forward.1}
  #allocation0 [shape = 'u32[]', space=smem, size = 0x4, offset = 0x4, fixed_abs, tag = 'smem constant byte address 0x4 - core index']
  #allocation1 [shape = 'u32[72,128]{1,0:T(1,128)}', space=vmem, size = 0x9000, scoped, tag = 'internal scratch']
  %s0 = inlined_call_operand.vmem [shape: f32[128,784], index: 0, kind: input, shape index: {}]
  %s1 = inlined_call_operand.vmem [shape: bf16[784,128], index: 1, kind: input, shape index: {}]
  %s2 = inlined_call_operand.vmem [shape: f32[1,128], index: 2, kind: input, shape index: {}]
  %s3 = inlined_call_operand.vmem [shape: bf16[128,256], index: 3, kind: input, shape index: {}]
  %s4 = inlined_call_operand.vmem [shape: f32[1,256], index: 4, kind: input, shape index: {}]
  %s5 = inlined_call_operand.vmem [shape: bf16[256,128], index: 5, kind: input, shape index: {}]
  %s6 = inlined_call_operand.vmem [shape: f32[1,128], index: 6, kind: input, shape index: {}]
  %s7 = inlined_call_operand.vmem [shape: f32[128,128], index: 7, kind: output, shape index: {}]
  %s8 = sld [smem:[#allocation0]]
  $region38: #{mnist_classifier_forward.1} parent=0
    _
  %s10 = ssub.s32 1, %s8
  %s11 = scalar_select 0, %s10, %s8
  // Predicated region
  $region2: #{mnist_classifier_forward.1} parent=0 // pred_check
    _
  $region3: #{mnist_classifier_forward.1} parent=0 // pred_check_branch
    %13 = sbr.rel (0) target = $region5
  $region4: #{mnist_classifier_forward.1} parent=0 // pred_region
    _
  $region5: #{mnist_classifier_forward.1} parent=0 // pred_fallthru
    _
  // Predicated region
  $region6: #{mnist_classifier_forward.1} parent=0 // pred_check
    _
  $region7: #{mnist_classifier_forward.1} parent=0 // pred_check_branch
    %15 = sbr.rel (0) target = $region9
  $region8: #{mnist_classifier_forward.1} parent=0 // pred_region
    _
  $region9: #{mnist_classifier_forward.1} parent=0 // pred_fallthru
    _
  // Predicated region
  $region10: #{mnist_classifier_forward.1} parent=0 // pred_check
    _
  $region11: #{mnist_classifier_forward.1} parent=0 // pred_check_branch
    %17 = sbr.rel (0) target = $region13
  $region12: #{mnist_classifier_forward.1} parent=0 // pred_region
    _
  $region13: #{mnist_classifier_forward.1} parent=0 // pred_fallthru
    _
  // Predicated region
  $region14: #{mnist_classifier_forward.1} parent=0 // pred_check
    _
  $region15: #{mnist_classifier_forward.1} parent=0 // pred_check_branch
    %19 = sbr.rel (0) target = $region17
  $region16: #{mnist_classifier_forward.1} parent=0 // pred_region
    _
  $region17: #{mnist_classifier_forward.1} parent=0 // pred_fallthru
    _
  // Predicated region
  $region18: #{mnist_classifier_forward.1} parent=0 // pred_check
    _
  $region19: #{mnist_classifier_forward.1} parent=0 // pred_check_branch
    %21 = sbr.rel (0) target = $region21
  $region20: #{mnist_classifier_forward.1} parent=0 // pred_region
    _
  $region21: #{mnist_classifier_forward.1} parent=0 // pred_fallthru
    _
  // Predicated region
  $region22: #{mnist_classifier_forward.1} parent=0 // pred_check
    _
  $region23: #{mnist_classifier_forward.1} parent=0 // pred_check_branch
    %23 = sbr.rel (0) target = $region25
  $region24: #{mnist_classifier_forward.1} parent=0 // pred_region
    _
  $region25: #{mnist_classifier_forward.1} parent=0 // pred_fallthru
    _
  // Predicated region
  $region26: #{mnist_classifier_forward.1} parent=0 // pred_check
    _
  $region27: #{mnist_classifier_forward.1} parent=0 // pred_check_branch
    %25 = sbr.rel (0) target = $region29
  $region28: #{mnist_classifier_forward.1} parent=0 // pred_region
    _
  $region29: #{mnist_classifier_forward.1} parent=0 // pred_fallthru
    _
  %v27 = vld [vmem:[%s0] sm:$0xff]
  %v28 = vld [vmem:[%s0 + $0x8] sm:$0xff]
  %v29 = vld [vmem:[%s0 + $0x10] sm:$0xff]
  %v30 = vld [vmem:[%s0 + $0x18] sm:$0xff]
  %v31 = vld [vmem:[%s0 + $0x20] sm:$0xff]
  %v32 = vld [vmem:[%s0 + $0x28] sm:$0xff]
  %v33 = vld [vmem:[%s0 + $0x30] sm:$0xff]
  %v34 = vld [vmem:[%s0 + $0x38] sm:$0xff]
  %v35 = vld [vmem:[%s0 + $0x40] sm:$0xff]
  %v36 = vld [vmem:[%s0 + $0x48] sm:$0xff]
  %v37 = vld [vmem:[%s0 + $0x50] sm:$0xff]
  %v38 = vld [vmem:[%s0 + $0x58] sm:$0xff]
  %v39 = vld [vmem:[%s0 + $0x60] sm:$0xff]
  %v40 = vld [vmem:[%s0 + $0x68] sm:$0xff]
  %v41 = vld [vmem:[%s0 + $0x70] sm:$0xff]
  %v42 = vld [vmem:[%s0 + $0x78] sm:$0xff]
  %v43 = vld [vmem:[%s0 + $0x80] sm:$0xff]
  %v44 = vld [vmem:[%s0 + $0x88] sm:$0xff]
  %v45 = vld [vmem:[%s0 + $0x90] sm:$0xff]
  %v46 = vld [vmem:[%s0 + $0x98] sm:$0xff]
  %v47 = vld [vmem:[%s0 + $0xa0] sm:$0xff]
  %v48 = vld [vmem:[%s0 + $0xa8] sm:$0xff]
  %v49 = vld [vmem:[%s0 + $0xb0] sm:$0xff]
  %v50 = vld [vmem:[%s0 + $0xb8] sm:$0xff]
  %v51 = vld [vmem:[%s0 + $0xc0] sm:$0xff]
  %v52 = vld [vmem:[%s0 + $0xc8] sm:$0xff]
  %v53 = vld [vmem:[%s0 + $0xd0] sm:$0xff]
  %v54 = vld [vmem:[%s0 + $0xd8] sm:$0xff]
  %v55 = vld [vmem:[%s0 + $0xe0] sm:$0xff]
  %v56 = vld [vmem:[%s0 + $0xe8] sm:$0xff]
  %v57 = vld [vmem:[%s0 + $0xf0] sm:$0xff]
  %v58 = vld [vmem:[%s0 + $0xf8] sm:$0xff]
  %v59 = vld [vmem:[%s0 + $0x100] sm:$0xff]
  %v60 = vld [vmem:[%s0 + $0x108] sm:$0xff]
  %v61 = vld [vmem:[%s0 + $0x110] sm:$0xff]
  %v62 = vld [vmem:[%s0 + $0x118] sm:$0xff]
  %v63 = vld [vmem:[%s0 + $0x120] sm:$0xff]
  %v64 = vld [vmem:[%s0 + $0x128] sm:$0xff]
  %v65 = vld [vmem:[%s0 + $0x130] sm:$0xff]
  %v66 = vld [vmem:[%s0 + $0x138] sm:$0xff]
  %v67 = vld [vmem:[%s0 + $0x140] sm:$0xff]
  %v68 = vld [vmem:[%s0 + $0x148] sm:$0xff]
  %v69 = vld [vmem:[%s0 + $0x150] sm:$0xff]
  %v70 = vld [vmem:[%s0 + $0x158] sm:$0xff]
  %v71 = vld [vmem:[%s0 + $0x160] sm:$0xff]
  %v72 = vld [vmem:[%s0 + $0x168] sm:$0xff]
  %v73 = vld [vmem:[%s0 + $0x170] sm:$0xff]
  %v74 = vld [vmem:[%s0 + $0x178] sm:$0xff]
  %v75 = vld [vmem:[%s0 + $0x180] sm:$0xff]
  %v76 = vld [vmem:[%s0 + $0x188] sm:$0xff]
  %v77 = vld [vmem:[%s0 + $0x190] sm:$0xff]
  %v78 = vld [vmem:[%s0 + $0x198] sm:$0xff]
  %v79 = vld [vmem:[%s0 + $0x1a0] sm:$0xff]
  %v80 = vld [vmem:[%s0 + $0x1a8] sm:$0xff]
  %v81 = vld [vmem:[%s0 + $0x1b0] sm:$0xff]
  %v82 = vld [vmem:[%s0 + $0x1b8] sm:$0xff]
  %v83 = vld [vmem:[%s0 + $0x1c0] sm:$0xff]
  %v84 = vld [vmem:[%s0 + $0x1c8] sm:$0xff]
  %v85 = vld [vmem:[%s0 + $0x1d0] sm:$0xff]
  %v86 = vld [vmem:[%s0 + $0x1d8] sm:$0xff]
  %v87 = vld [vmem:[%s0 + $0x1e0] sm:$0xff]
  %v88 = vld [vmem:[%s0 + $0x1e8] sm:$0xff]
  %v89 = vld [vmem:[%s0 + $0x1f0] sm:$0xff]
  %v90 = vld [vmem:[%s0 + $0x1f8] sm:$0xff]
  %v91 = vld [vmem:[%s0 + $0x200] sm:$0xff]
  %v92 = vld [vmem:[%s0 + $0x208] sm:$0xff]
  %v93 = vld [vmem:[%s0 + $0x210] sm:$0xff]
  %v94 = vld [vmem:[%s0 + $0x218] sm:$0xff]
  %v95 = vld [vmem:[%s0 + $0x220] sm:$0xff]
  %v96 = vld [vmem:[%s0 + $0x228] sm:$0xff]
  %v97 = vld [vmem:[%s0 + $0x230] sm:$0xff]
  %v98 = vld [vmem:[%s0 + $0x238] sm:$0xff]
  %v99 = vld [vmem:[%s0 + $0x240] sm:$0xff]
  %v100 = vld [vmem:[%s0 + $0x248] sm:$0xff]
  %v101 = vld [vmem:[%s0 + $0x250] sm:$0xff]
  %v102 = vld [vmem:[%s0 + $0x258] sm:$0xff]
  %v103 = vld [vmem:[%s0 + $0x260] sm:$0xff]
  %v104 = vld [vmem:[%s0 + $0x268] sm:$0xff]
  %v105 = vld [vmem:[%s0 + $0x270] sm:$0xff]
  %v106 = vld [vmem:[%s0 + $0x278] sm:$0xff]
  %v107 = vld [vmem:[%s0 + $0x280] sm:$0xff]
  %v108 = vld [vmem:[%s0 + $0x288] sm:$0xff]
  %v109 = vld [vmem:[%s0 + $0x290] sm:$0xff]
  %v110 = vld [vmem:[%s0 + $0x298] sm:$0xff]
  %v111 = vld [vmem:[%s0 + $0x2a0] sm:$0xff]
  %v112 = vld [vmem:[%s0 + $0x2a8] sm:$0xff]
  %v113 = vld [vmem:[%s0 + $0x2b0] sm:$0xff]
  %v114 = vld [vmem:[%s0 + $0x2b8] sm:$0xff]
  %v115 = vld [vmem:[%s0 + $0x2c0] sm:$0xff]
  %v116 = vld [vmem:[%s0 + $0x2c8] sm:$0xff]
  %v117 = vld [vmem:[%s0 + $0x2d0] sm:$0xff]
  %v118 = vld [vmem:[%s0 + $0x2d8] sm:$0xff]
  %v119 = vld [vmem:[%s0 + $0x2e0] sm:$0xff]
  %v120 = vld [vmem:[%s0 + $0x2e8] sm:$0xff]
  %v121 = vld [vmem:[%s0 + $0x2f0] sm:$0xff]
  %v122 = vld [vmem:[%s0 + $0x2f8] sm:$0xff]
  %v123 = vld [vmem:[%s0 + $0x300] sm:$0xff]
  %v124 = vld [vmem:[%s0 + $0x308] sm:$0xff]
  %v125 = vld [vmem:[%s0 + $0x310] sm:$0xff]
  %v126 = vld [vmem:[%s0 + $0x318] sm:$0xff]
  %v127 = vld [vmem:[%s0 + $0x320] sm:$0xff]
  %v128 = vld [vmem:[%s0 + $0x328] sm:$0xff]
  %v129 = vld [vmem:[%s0 + $0x330] sm:$0xff]
  %v130 = vld [vmem:[%s0 + $0x338] sm:$0xff]
  %v131 = vld [vmem:[%s0 + $0x340] sm:$0xff]
  %v132 = vld [vmem:[%s0 + $0x348] sm:$0xff]
  %v133 = vld [vmem:[%s0 + $0x350] sm:$0xff]
  %v134 = vld [vmem:[%s0 + $0x358] sm:$0xff]
  %v135 = vld [vmem:[%s0 + $0x360] sm:$0xff]
  %v136 = vld [vmem:[%s0 + $0x368] sm:$0xff]
  %v137 = vld [vmem:[%s0 + $0x370] sm:$0xff]
  %v138 = vld [vmem:[%s0 + $0x378] sm:$0xff]
  %v139 = vpack.c.bf16 %v34, %v27
  %v140 = vpack.c.bf16 %v35, %v28
  %v141 = vpack.c.bf16 %v36, %v29
  %v142 = vpack.c.bf16 %v37, %v30
  %v143 = vpack.c.bf16 %v38, %v31
  %v144 = vpack.c.bf16 %v39, %v32
  %v145 = vpack.c.bf16 %v40, %v33
  %v146 = vpack.c.bf16 %v48, %v41
  %v147 = vpack.c.bf16 %v49, %v42
  %v148 = vpack.c.bf16 %v50, %v43
  %v149 = vpack.c.bf16 %v51, %v44
  %v150 = vpack.c.bf16 %v52, %v45
  %v151 = vpack.c.bf16 %v53, %v46
  %v152 = vpack.c.bf16 %v54, %v47
  %v153 = vpack.c.bf16 %v62, %v55
  %v154 = vpack.c.bf16 %v63, %v56
  %v155 = vpack.c.bf16 %v64, %v57
  %v156 = vpack.c.bf16 %v65, %v58
  %v157 = vpack.c.bf16 %v66, %v59
  %v158 = vpack.c.bf16 %v67, %v60
  %v159 = vpack.c.bf16 %v68, %v61
  %v160 = vpack.c.bf16 %v76, %v69
  %v161 = vpack.c.bf16 %v77, %v70
  %v162 = vpack.c.bf16 %v78, %v71
  %v163 = vpack.c.bf16 %v79, %v72
  %v164 = vpack.c.bf16 %v80, %v73
  %v165 = vpack.c.bf16 %v81, %v74
  %v166 = vpack.c.bf16 %v82, %v75
  %v167 = vpack.c.bf16 %v90, %v83
  %v168 = vpack.c.bf16 %v91, %v84
  %v169 = vpack.c.bf16 %v92, %v85
  %v170 = vpack.c.bf16 %v93, %v86
  %v171 = vpack.c.bf16 %v94, %v87
  %v172 = vpack.c.bf16 %v95, %v88
  %v173 = vpack.c.bf16 %v96, %v89
  %v174 = vpack.c.bf16 %v104, %v97
  %v175 = vpack.c.bf16 %v105, %v98
  %v176 = vpack.c.bf16 %v106, %v99
  %v177 = vpack.c.bf16 %v107, %v100
  %v178 = vpack.c.bf16 %v108, %v101
  %v179 = vpack.c.bf16 %v109, %v102
  %v180 = vpack.c.bf16 %v110, %v103
  %v181 = vpack.c.bf16 %v118, %v111
  %v182 = vpack.c.bf16 %v119, %v112
  %v183 = vpack.c.bf16 %v120, %v113
  %v184 = vpack.c.bf16 %v121, %v114
  %v185 = vpack.c.bf16 %v122, %v115
  %v186 = vpack.c.bf16 %v123, %v116
  %v187 = vpack.c.bf16 %v124, %v117
  %v188 = vpack.c.bf16 %v132, %v125
  %v189 = vpack.c.bf16 %v133, %v126
  %v190 = vpack.c.bf16 %v134, %v127
  %v191 = vpack.c.bf16 %v135, %v128
  %v192 = vpack.c.bf16 %v136, %v129
  %v193 = vpack.c.bf16 %v137, %v130
  %v194 = vpack.c.bf16 %v138, %v131
  %v195 = vld [vmem:[%s1] sm:$0xf]
  %v196 = vld [vmem:[%s1 + $0x4] sm:$0xf]
  %v197 = vld [vmem:[%s1 + $0x8] sm:$0xf]
  %v198 = vld [vmem:[%s1 + $0xc] sm:$0xf]
  %v199 = vld [vmem:[%s1 + $0x10] sm:$0xf]
  %v200 = vld [vmem:[%s1 + $0x14] sm:$0xf]
  %v201 = vld [vmem:[%s1 + $0x18] sm:$0xf]
  %v202 = vld [vmem:[%s1 + $0x1c] sm:$0xf]
  %v203 = vld [vmem:[%s1 + $0x20] sm:$0xf]
  %v204 = vld [vmem:[%s1 + $0x24] sm:$0xf]
  %v205 = vld [vmem:[%s1 + $0x28] sm:$0xf]
  %v206 = vld [vmem:[%s1 + $0x2c] sm:$0xf]
  %v207 = vld [vmem:[%s1 + $0x30] sm:$0xf]
  %v208 = vld [vmem:[%s1 + $0x34] sm:$0xf]
  %v209 = vld [vmem:[%s1 + $0x38] sm:$0xf]
  %v210 = vld [vmem:[%s1 + $0x3c] sm:$0xf]
  %v211 = vld [vmem:[%s1 + $0x40] sm:$0xf]
  %v212 = vld [vmem:[%s1 + $0x44] sm:$0xf]
  %v213 = vld [vmem:[%s1 + $0x48] sm:$0xf]
  %v214 = vld [vmem:[%s1 + $0x4c] sm:$0xf]
  %v215 = vld [vmem:[%s1 + $0x50] sm:$0xf]
  %v216 = vld [vmem:[%s1 + $0x54] sm:$0xf]
  %v217 = vld [vmem:[%s1 + $0x58] sm:$0xf]
  %v218 = vld [vmem:[%s1 + $0x5c] sm:$0xf]
  %v219 = vld [vmem:[%s1 + $0x60] sm:$0xf]
  %v220 = vld [vmem:[%s1 + $0x64] sm:$0xf]
  %v221 = vld [vmem:[%s1 + $0x68] sm:$0xf]
  %v222 = vld [vmem:[%s1 + $0x6c] sm:$0xf]
  %v223 = vld [vmem:[%s1 + $0x70] sm:$0xf]
  %v224 = vld [vmem:[%s1 + $0x74] sm:$0xf]
  %v225 = vld [vmem:[%s1 + $0x78] sm:$0xf]
  %v226 = vld [vmem:[%s1 + $0x7c] sm:$0xf]
  %v227 = vld [vmem:[%s1 + $0x80] sm:$0xf]
  %v228 = vld [vmem:[%s1 + $0x84] sm:$0xf]
  %v229 = vld [vmem:[%s1 + $0x88] sm:$0xf]
  %v230 = vld [vmem:[%s1 + $0x8c] sm:$0xf]
  %v231 = vld [vmem:[%s1 + $0x90] sm:$0xf]
  %v232 = vld [vmem:[%s1 + $0x94] sm:$0xf]
  %v233 = vld [vmem:[%s1 + $0x98] sm:$0xf]
  %v234 = vld [vmem:[%s1 + $0x9c] sm:$0xf]
  %v235 = vld [vmem:[%s1 + $0xa0] sm:$0xf]
  %v236 = vld [vmem:[%s1 + $0xa4] sm:$0xf]
  %v237 = vld [vmem:[%s1 + $0xa8] sm:$0xf]
  %v238 = vld [vmem:[%s1 + $0xac] sm:$0xf]
  %v239 = vld [vmem:[%s1 + $0xb0] sm:$0xf]
  %v240 = vld [vmem:[%s1 + $0xb4] sm:$0xf]
  %v241 = vld [vmem:[%s1 + $0xb8] sm:$0xf]
  %v242 = vld [vmem:[%s1 + $0xbc] sm:$0xf]
  %v243 = vld [vmem:[%s1 + $0xc0] sm:$0xf]
  %v244 = vld [vmem:[%s1 + $0xc4] sm:$0xf]
  %v245 = vld [vmem:[%s1 + $0xc8] sm:$0xf]
  %v246 = vld [vmem:[%s1 + $0xcc] sm:$0xf]
  %v247 = vld [vmem:[%s1 + $0xd0] sm:$0xf]
  %v248 = vld [vmem:[%s1 + $0xd4] sm:$0xf]
  %v249 = vld [vmem:[%s1 + $0xd8] sm:$0xf]
  %v250 = vld [vmem:[%s1 + $0xdc] sm:$0xf]
  %v251 = vld [vmem:[%s1 + $0xe0] sm:$0xf]
  %v252 = vld [vmem:[%s1 + $0xe4] sm:$0xf]
  %v253 = vld [vmem:[%s1 + $0xe8] sm:$0xf]
  %v254 = vld [vmem:[%s1 + $0xec] sm:$0xf]
  %v255 = vld [vmem:[%s1 + $0xf0] sm:$0xf]
  %v256 = vld [vmem:[%s1 + $0xf4] sm:$0xf]
  %v257 = vld [vmem:[%s1 + $0xf8] sm:$0xf]
  %v258 = vld [vmem:[%s1 + $0xfc] sm:$0xf]
  %v259 = vld [vmem:[%s1 + $0x100] sm:$0xf]
  %v260 = vld [vmem:[%s1 + $0x104] sm:$0xf]
  %v261 = vld [vmem:[%s1 + $0x108] sm:$0xf]
  %v262 = vld [vmem:[%s1 + $0x10c] sm:$0xf]
  %v263 = vld [vmem:[%s1 + $0x110] sm:$0xf]
  %v264 = vld [vmem:[%s1 + $0x114] sm:$0xf]
  %v265 = vld [vmem:[%s1 + $0x118] sm:$0xf]
  %v266 = vld [vmem:[%s1 + $0x11c] sm:$0xf]
  %v267 = vld [vmem:[%s1 + $0x120] sm:$0xf]
  %v268 = vld [vmem:[%s1 + $0x124] sm:$0xf]
  %v269 = vld [vmem:[%s1 + $0x128] sm:$0xf]
  %v270 = vld [vmem:[%s1 + $0x12c] sm:$0xf]
  %v271 = vld [vmem:[%s1 + $0x130] sm:$0xf]
  %v272 = vld [vmem:[%s1 + $0x134] sm:$0xf]
  %v273 = vld [vmem:[%s1 + $0x138] sm:$0xf]
  %v274 = vld [vmem:[%s1 + $0x13c] sm:$0xf]
  %v275 = vld [vmem:[%s1 + $0x140] sm:$0xf]
  %v276 = vld [vmem:[%s1 + $0x144] sm:$0xf]
  %v277 = vld [vmem:[%s1 + $0x148] sm:$0xf]
  %v278 = vld [vmem:[%s1 + $0x14c] sm:$0xf]
  %v279 = vld [vmem:[%s1 + $0x150] sm:$0xf]
  %v280 = vld [vmem:[%s1 + $0x154] sm:$0xf]
  %v281 = vld [vmem:[%s1 + $0x158] sm:$0xf]
  %v282 = vld [vmem:[%s1 + $0x15c] sm:$0xf]
  %v283 = vld [vmem:[%s1 + $0x160] sm:$0xf]
  %v284 = vld [vmem:[%s1 + $0x164] sm:$0xf]
  %v285 = vld [vmem:[%s1 + $0x168] sm:$0xf]
  %v286 = vld [vmem:[%s1 + $0x16c] sm:$0xf]
  %v287 = vld [vmem:[%s1 + $0x170] sm:$0xf]
  %v288 = vld [vmem:[%s1 + $0x174] sm:$0xf]
  %v289 = vld [vmem:[%s1 + $0x178] sm:$0xf]
  %v290 = vld [vmem:[%s1 + $0x17c] sm:$0xf]
  %v291 = vld [vmem:[%s1 + $0x180] sm:$0xf]
  %v292 = vld [vmem:[%s1 + $0x184] sm:$0xf]
  %v293 = vld [vmem:[%s2] sm:$0x1]
  %v295 = vperm.slane %v293, 0
  %v395 = vunpack.c.l.b16 %v195
  %v396 = vunpack.c.l.b16 %v196
  %v397 = vunpack.c.l.b16 %v197
  %v398 = vunpack.c.l.b16 %v198
  %v399 = vunpack.c.l.b16 %v199
  %v400 = vunpack.c.l.b16 %v200
  %v401 = vunpack.c.l.b16 %v201
  %v402 = vunpack.c.l.b16 %v202
  %v403 = vunpack.c.l.b16 %v203
  %v404 = vunpack.c.l.b16 %v204
  %v405 = vunpack.c.l.b16 %v205
  %v406 = vunpack.c.l.b16 %v206
  %v407 = vunpack.c.l.b16 %v207
  %v408 = vunpack.c.l.b16 %v208
  %v409 = vunpack.c.l.b16 %v209
  %v410 = vunpack.c.l.b16 %v210
  %v411 = vunpack.c.l.b16 %v211
  %v412 = vunpack.c.l.b16 %v212
  %v413 = vunpack.c.l.b16 %v213
  %v414 = vunpack.c.l.b16 %v214
  %v415 = vunpack.c.l.b16 %v215
  %v416 = vunpack.c.l.b16 %v216
  %v417 = vunpack.c.l.b16 %v217
  %v418 = vunpack.c.l.b16 %v218
  %v419 = vunpack.c.l.b16 %v219
  %v420 = vunpack.c.l.b16 %v220
  %v421 = vunpack.c.l.b16 %v221
  %v422 = vunpack.c.l.b16 %v222
  %v423 = vunpack.c.l.b16 %v223
  %v424 = vunpack.c.l.b16 %v224
  %v425 = vunpack.c.l.b16 %v225
  %v426 = vunpack.c.l.b16 %v226
  %v427 = vunpack.c.l.b16 %v227
  %v428 = vunpack.c.l.b16 %v228
  %v429 = vunpack.c.l.b16 %v229
  %v430 = vunpack.c.l.b16 %v230
  %v431 = vunpack.c.l.b16 %v231
  %v432 = vunpack.c.l.b16 %v232
  %v433 = vunpack.c.l.b16 %v233
  %v434 = vunpack.c.l.b16 %v234
  %v435 = vunpack.c.l.b16 %v235
  %v436 = vunpack.c.l.b16 %v236
  %v437 = vunpack.c.l.b16 %v237
  %v438 = vunpack.c.l.b16 %v238
  %v439 = vunpack.c.l.b16 %v239
  %v440 = vunpack.c.l.b16 %v240
  %v441 = vunpack.c.l.b16 %v241
  %v442 = vunpack.c.l.b16 %v242
  %v443 = vunpack.c.l.b16 %v243
  %v444 = vunpack.c.l.b16 %v244
  %v445 = vunpack.c.l.b16 %v245
  %v446 = vunpack.c.l.b16 %v246
  %v447 = vunpack.c.l.b16 %v247
  %v448 = vunpack.c.l.b16 %v248
  %v449 = vunpack.c.l.b16 %v249
  %v450 = vunpack.c.l.b16 %v250
  %v451 = vunpack.c.l.b16 %v251
  %v452 = vunpack.c.l.b16 %v252
  %v453 = vunpack.c.l.b16 %v253
  %v454 = vunpack.c.l.b16 %v254
  %v455 = vunpack.c.l.b16 %v255
  %v456 = vunpack.c.l.b16 %v256
  %v457 = vunpack.c.l.b16 %v257
  %v458 = vunpack.c.l.b16 %v258
  %v459 = vunpack.c.l.b16 %v259
  %v460 = vunpack.c.l.b16 %v260
  %v461 = vunpack.c.l.b16 %v261
  %v462 = vunpack.c.l.b16 %v262
  %v463 = vunpack.c.l.b16 %v263
  %v464 = vunpack.c.l.b16 %v264
  %v465 = vunpack.c.l.b16 %v265
  %v466 = vunpack.c.l.b16 %v266
  %v467 = vunpack.c.l.b16 %v267
  %v468 = vunpack.c.l.b16 %v268
  %v469 = vunpack.c.l.b16 %v269
  %v470 = vunpack.c.l.b16 %v270
  %v471 = vunpack.c.l.b16 %v271
  %v472 = vunpack.c.l.b16 %v272
  %v473 = vunpack.c.l.b16 %v273
  %v474 = vunpack.c.l.b16 %v274
  %v475 = vunpack.c.l.b16 %v275
  %v476 = vunpack.c.l.b16 %v276
  %v477 = vunpack.c.l.b16 %v277
  %v478 = vunpack.c.l.b16 %v278
  %v479 = vunpack.c.l.b16 %v279
  %v480 = vunpack.c.l.b16 %v280
  %v481 = vunpack.c.l.b16 %v281
  %v482 = vunpack.c.l.b16 %v282
  %v483 = vunpack.c.l.b16 %v283
  %v484 = vunpack.c.l.b16 %v284
  %v485 = vunpack.c.l.b16 %v285
  %v486 = vunpack.c.l.b16 %v286
  %v487 = vunpack.c.l.b16 %v287
  %v488 = vunpack.c.l.b16 %v288
  %v489 = vunpack.c.l.b16 %v289
  %v490 = vunpack.c.l.b16 %v290
  %v491 = vunpack.c.l.b16 %v291
  %v492 = vunpack.c.l.b16 %v292
  %v493 = vpack.c.b16 %v396, %v395
  %v494 = vpack.c.b16 %v398, %v397
  %v495 = vpack.c.b16 %v400, %v399
  %v496 = vpack.c.b16 %v402, %v401
  %v497 = vpack.c.b16 %v404, %v403
  %v498 = vpack.c.b16 %v406, %v405
  %v499 = vpack.c.b16 %v408, %v407
  %v500 = vpack.c.b16 %v410, %v409
  %v501 = vpack.c.b16 %v412, %v411
  %v502 = vpack.c.b16 %v414, %v413
  %v503 = vpack.c.b16 %v416, %v415
  %v504 = vpack.c.b16 %v418, %v417
  %v505 = vpack.c.b16 %v420, %v419
  %v506 = vpack.c.b16 %v422, %v421
  %v507 = vpack.c.b16 %v424, %v423
  %v508 = vpack.c.b16 %v426, %v425
  %v509 = vpack.c.b16 %v428, %v427
  %v510 = vpack.c.b16 %v430, %v429
  %v511 = vpack.c.b16 %v432, %v431
  %v512 = vpack.c.b16 %v434, %v433
  %v513 = vpack.c.b16 %v436, %v435
  %v514 = vpack.c.b16 %v438, %v437
  %v515 = vpack.c.b16 %v440, %v439
  %v516 = vpack.c.b16 %v442, %v441
  %v517 = vpack.c.b16 %v444, %v443
  %v518 = vpack.c.b16 %v446, %v445
  %v519 = vpack.c.b16 %v448, %v447
  %v520 = vpack.c.b16 %v450, %v449
  %v521 = vpack.c.b16 %v452, %v451
  %v522 = vpack.c.b16 %v454, %v453
  %v523 = vpack.c.b16 %v456, %v455
  %v524 = vpack.c.b16 %v458, %v457
  %v525 = vpack.c.b16 %v460, %v459
  %v526 = vpack.c.b16 %v462, %v461
  %v527 = vpack.c.b16 %v464, %v463
  %v528 = vpack.c.b16 %v466, %v465
  %v529 = vpack.c.b16 %v468, %v467
  %v530 = vpack.c.b16 %v470, %v469
  %v531 = vpack.c.b16 %v472, %v471
  %v532 = vpack.c.b16 %v474, %v473
  %v533 = vpack.c.b16 %v476, %v475
  %v534 = vpack.c.b16 %v478, %v477
  %v535 = vpack.c.b16 %v480, %v479
  %v536 = vpack.c.b16 %v482, %v481
  %v537 = vpack.c.b16 %v484, %v483
  %v538 = vpack.c.b16 %v486, %v485
  %v539 = vpack.c.b16 %v488, %v487
  %v540 = vpack.c.b16 %v490, %v489
  %v541 = vpack.c.b16 %v492, %v491
  %vm591 = vcmask 130048
  %v593 = vsel %vm591, %v145, 0
  %v596 = vsel %vm591, %v152, 0
  %v599 = vsel %vm591, %v159, 0
  %v602 = vsel %vm591, %v166, 0
  %v605 = vsel %vm591, %v173, 0
  %v608 = vsel %vm591, %v180, 0
  %v611 = vsel %vm591, %v187, 0
  %v614 = vsel %vm591, %v194, 0
  %616 = vmatpush.bf16.msra.mxu0 %v500
  %617 = vmatpush.bf16.msra.mxu0 %v499
  %618 = vmatpush.bf16.msra.mxu0 %v498
  %619 = vmatpush.bf16.msra.mxu0 %v497
  %620 = vmatpush.bf16.msra.mxu0 %v496
  %621 = vmatpush.bf16.msra.mxu0 %v495
  %622 = vmatpush.bf16.msra.mxu0 %v494
  %623 = vmatpush.bf16.msra.mxu0 %v493
  %624 = vmatmul.bf16.gmra.mxu0 %v139
  %v625 = vpop.f32.mrf.mxu0
  %v626 = vadd.f32 %v295, %v625
  %v627 = vpop.f32.mrf.mxu0
  %v628 = vadd.f32 %v295, %v627
  %629 = vmatmul.bf16.gmra.mxu0 %v146
  %v630 = vpop.f32.mrf.mxu0
  %v631 = vadd.f32 %v295, %v630
  %v632 = vpop.f32.mrf.mxu0
  %v633 = vadd.f32 %v295, %v632
  %634 = vmatmul.bf16.gmra.mxu0 %v153
  %v635 = vpop.f32.mrf.mxu0
  %v636 = vadd.f32 %v295, %v635
  %v637 = vpop.f32.mrf.mxu0
  %v638 = vadd.f32 %v295, %v637
  %639 = vmatmul.bf16.gmra.mxu0 %v160
  %v640 = vpop.f32.mrf.mxu0
  %v641 = vadd.f32 %v295, %v640
  %v642 = vpop.f32.mrf.mxu0
  %v643 = vadd.f32 %v295, %v642
  %644 = vmatmul.bf16.gmra.mxu0 %v167
  %v645 = vpop.f32.mrf.mxu0
  %v646 = vadd.f32 %v295, %v645
  %v647 = vpop.f32.mrf.mxu0
  %v648 = vadd.f32 %v295, %v647
  %649 = vmatmul.bf16.gmra.mxu0 %v174
  %v650 = vpop.f32.mrf.mxu0
  %v651 = vadd.f32 %v295, %v650
  %v652 = vpop.f32.mrf.mxu0
  %v653 = vadd.f32 %v295, %v652
  %654 = vmatmul.bf16.gmra.mxu0 %v181
  %v655 = vpop.f32.mrf.mxu0
  %v656 = vadd.f32 %v295, %v655
  %v657 = vpop.f32.mrf.mxu0
  %v658 = vadd.f32 %v295, %v657
  %659 = vmatmul.bf16.gmra.mxu0 %v188
  %v660 = vpop.f32.mrf.mxu0
  %v661 = vadd.f32 %v295, %v660
  %v662 = vpop.f32.mrf.mxu0
  %v663 = vadd.f32 %v295, %v662
  %664 = vdwg.mxu0
  %665 = vmatpush.bf16.msra.mxu0 %v508
  %666 = vmatpush.bf16.msra.mxu0 %v507
  %667 = vmatpush.bf16.msra.mxu0 %v506
  %668 = vmatpush.bf16.msra.mxu0 %v505
  %669 = vmatpush.bf16.msra.mxu0 %v504
  %670 = vmatpush.bf16.msra.mxu0 %v503
  %671 = vmatpush.bf16.msra.mxu0 %v502
  %672 = vmatpush.bf16.msra.mxu0 %v501
  %673 = vmatmul.bf16.gmra.mxu0 %v140
  %v674 = vpop.f32.mrf.mxu0
  %v675 = vadd.f32 %v626, %v674
  %v676 = vpop.f32.mrf.mxu0
  %v677 = vadd.f32 %v628, %v676
  %678 = vmatmul.bf16.gmra.mxu0 %v147
  %v679 = vpop.f32.mrf.mxu0
  %v680 = vadd.f32 %v631, %v679
  %v681 = vpop.f32.mrf.mxu0
  %v682 = vadd.f32 %v633, %v681
  %683 = vmatmul.bf16.gmra.mxu0 %v154
  %v684 = vpop.f32.mrf.mxu0
  %v685 = vadd.f32 %v636, %v684
  %v686 = vpop.f32.mrf.mxu0
  %v687 = vadd.f32 %v638, %v686
  %688 = vmatmul.bf16.gmra.mxu0 %v161
  %v689 = vpop.f32.mrf.mxu0
  %v690 = vadd.f32 %v641, %v689
  %v691 = vpop.f32.mrf.mxu0
  %v692 = vadd.f32 %v643, %v691
  %693 = vmatmul.bf16.gmra.mxu0 %v168
  %v694 = vpop.f32.mrf.mxu0
  %v695 = vadd.f32 %v646, %v694
  %v696 = vpop.f32.mrf.mxu0
  %v697 = vadd.f32 %v648, %v696
  %698 = vmatmul.bf16.gmra.mxu0 %v175
  %v699 = vpop.f32.mrf.mxu0
  %v700 = vadd.f32 %v651, %v699
  %v701 = vpop.f32.mrf.mxu0
  %v702 = vadd.f32 %v653, %v701
  %703 = vmatmul.bf16.gmra.mxu0 %v182
  %v704 = vpop.f32.mrf.mxu0
  %v705 = vadd.f32 %v656, %v704
  %v706 = vpop.f32.mrf.mxu0
  %v707 = vadd.f32 %v658, %v706
  %708 = vmatmul.bf16.gmra.mxu0 %v189
  %v709 = vpop.f32.mrf.mxu0
  %v710 = vadd.f32 %v661, %v709
  %v711 = vpop.f32.mrf.mxu0
  %v712 = vadd.f32 %v663, %v711
  %713 = vdwg.mxu0
  %714 = vmatpush.bf16.msra.mxu0 %v516
  %715 = vmatpush.bf16.msra.mxu0 %v515
  %716 = vmatpush.bf16.msra.mxu0 %v514
  %717 = vmatpush.bf16.msra.mxu0 %v513
  %718 = vmatpush.bf16.msra.mxu0 %v512
  %719 = vmatpush.bf16.msra.mxu0 %v511
  %720 = vmatpush.bf16.msra.mxu0 %v510
  %721 = vmatpush.bf16.msra.mxu0 %v509
  %722 = vmatmul.bf16.gmra.mxu0 %v141
  %v723 = vpop.f32.mrf.mxu0
  %v724 = vadd.f32 %v675, %v723
  %v725 = vpop.f32.mrf.mxu0
  %v726 = vadd.f32 %v677, %v725
  %727 = vmatmul.bf16.gmra.mxu0 %v148
  %v728 = vpop.f32.mrf.mxu0
  %v729 = vadd.f32 %v680, %v728
  %v730 = vpop.f32.mrf.mxu0
  %v731 = vadd.f32 %v682, %v730
  %732 = vmatmul.bf16.gmra.mxu0 %v155
  %v733 = vpop.f32.mrf.mxu0
  %v734 = vadd.f32 %v685, %v733
  %v735 = vpop.f32.mrf.mxu0
  %v736 = vadd.f32 %v687, %v735
  %737 = vmatmul.bf16.gmra.mxu0 %v162
  %v738 = vpop.f32.mrf.mxu0
  %v739 = vadd.f32 %v690, %v738
  %v740 = vpop.f32.mrf.mxu0
  %v741 = vadd.f32 %v692, %v740
  %742 = vmatmul.bf16.gmra.mxu0 %v169
  %v743 = vpop.f32.mrf.mxu0
  %v744 = vadd.f32 %v695, %v743
  %v745 = vpop.f32.mrf.mxu0
  %v746 = vadd.f32 %v697, %v745
  %747 = vmatmul.bf16.gmra.mxu0 %v176
  %v748 = vpop.f32.mrf.mxu0
  %v749 = vadd.f32 %v700, %v748
  %v750 = vpop.f32.mrf.mxu0
  %v751 = vadd.f32 %v702, %v750
  %752 = vmatmul.bf16.gmra.mxu0 %v183
  %v753 = vpop.f32.mrf.mxu0
  %v754 = vadd.f32 %v705, %v753
  %v755 = vpop.f32.mrf.mxu0
  %v756 = vadd.f32 %v707, %v755
  %757 = vmatmul.bf16.gmra.mxu0 %v190
  %v758 = vpop.f32.mrf.mxu0
  %v759 = vadd.f32 %v710, %v758
  %v760 = vpop.f32.mrf.mxu0
  %v761 = vadd.f32 %v712, %v760
  %762 = vdwg.mxu0
  %763 = vmatpush.bf16.msra.mxu0 %v524
  %764 = vmatpush.bf16.msra.mxu0 %v523
  %765 = vmatpush.bf16.msra.mxu0 %v522
  %766 = vmatpush.bf16.msra.mxu0 %v521
  %767 = vmatpush.bf16.msra.mxu0 %v520
  %768 = vmatpush.bf16.msra.mxu0 %v519
  %769 = vmatpush.bf16.msra.mxu0 %v518
  %770 = vmatpush.bf16.msra.mxu0 %v517
  %771 = vmatmul.bf16.gmra.mxu0 %v142
  %v772 = vpop.f32.mrf.mxu0
  %v773 = vadd.f32 %v724, %v772
  %v774 = vpop.f32.mrf.mxu0
  %v775 = vadd.f32 %v726, %v774
  %776 = vmatmul.bf16.gmra.mxu0 %v149
  %v777 = vpop.f32.mrf.mxu0
  %v778 = vadd.f32 %v729, %v777
  %v779 = vpop.f32.mrf.mxu0
  %v780 = vadd.f32 %v731, %v779
  %781 = vmatmul.bf16.gmra.mxu0 %v156
  %v782 = vpop.f32.mrf.mxu0
  %v783 = vadd.f32 %v734, %v782
  %v784 = vpop.f32.mrf.mxu0
  %v785 = vadd.f32 %v736, %v784
  %786 = vmatmul.bf16.gmra.mxu0 %v163
  %v787 = vpop.f32.mrf.mxu0
  %v788 = vadd.f32 %v739, %v787
  %v789 = vpop.f32.mrf.mxu0
  %v790 = vadd.f32 %v741, %v789
  %791 = vmatmul.bf16.gmra.mxu0 %v170
  %v792 = vpop.f32.mrf.mxu0
  %v793 = vadd.f32 %v744, %v792
  %v794 = vpop.f32.mrf.mxu0
  %v795 = vadd.f32 %v746, %v794
  %796 = vmatmul.bf16.gmra.mxu0 %v177
  %v797 = vpop.f32.mrf.mxu0
  %v798 = vadd.f32 %v749, %v797
  %v799 = vpop.f32.mrf.mxu0
  %v800 = vadd.f32 %v751, %v799
  %801 = vmatmul.bf16.gmra.mxu0 %v184
  %v802 = vpop.f32.mrf.mxu0
  %v803 = vadd.f32 %v754, %v802
  %v804 = vpop.f32.mrf.mxu0
  %v805 = vadd.f32 %v756, %v804
  %806 = vmatmul.bf16.gmra.mxu0 %v191
  %v807 = vpop.f32.mrf.mxu0
  %v808 = vadd.f32 %v759, %v807
  %v809 = vpop.f32.mrf.mxu0
  %v810 = vadd.f32 %v761, %v809
  %811 = vdwg.mxu0
  %812 = vmatpush.bf16.msra.mxu0 %v532
  %813 = vmatpush.bf16.msra.mxu0 %v531
  %814 = vmatpush.bf16.msra.mxu0 %v530
  %815 = vmatpush.bf16.msra.mxu0 %v529
  %816 = vmatpush.bf16.msra.mxu0 %v528
  %817 = vmatpush.bf16.msra.mxu0 %v527
  %818 = vmatpush.bf16.msra.mxu0 %v526
  %819 = vmatpush.bf16.msra.mxu0 %v525
  %820 = vmatmul.bf16.gmra.mxu0 %v143
  %v821 = vpop.f32.mrf.mxu0
  %v822 = vadd.f32 %v773, %v821
  %v823 = vpop.f32.mrf.mxu0
  %v824 = vadd.f32 %v775, %v823
  %825 = vmatmul.bf16.gmra.mxu0 %v150
  %v826 = vpop.f32.mrf.mxu0
  %v827 = vadd.f32 %v778, %v826
  %v828 = vpop.f32.mrf.mxu0
  %v829 = vadd.f32 %v780, %v828
  %830 = vmatmul.bf16.gmra.mxu0 %v157
  %v831 = vpop.f32.mrf.mxu0
  %v832 = vadd.f32 %v783, %v831
  %v833 = vpop.f32.mrf.mxu0
  %v834 = vadd.f32 %v785, %v833
  %835 = vmatmul.bf16.gmra.mxu0 %v164
  %v836 = vpop.f32.mrf.mxu0
  %v837 = vadd.f32 %v788, %v836
  %v838 = vpop.f32.mrf.mxu0
  %v839 = vadd.f32 %v790, %v838
  %840 = vmatmul.bf16.gmra.mxu0 %v171
  %v841 = vpop.f32.mrf.mxu0
  %v842 = vadd.f32 %v793, %v841
  %v843 = vpop.f32.mrf.mxu0
  %v844 = vadd.f32 %v795, %v843
  %845 = vmatmul.bf16.gmra.mxu0 %v178
  %v846 = vpop.f32.mrf.mxu0
  %v847 = vadd.f32 %v798, %v846
  %v848 = vpop.f32.mrf.mxu0
  %v849 = vadd.f32 %v800, %v848
  %850 = vmatmul.bf16.gmra.mxu0 %v185
  %v851 = vpop.f32.mrf.mxu0
  %v852 = vadd.f32 %v803, %v851
  %v853 = vpop.f32.mrf.mxu0
  %v854 = vadd.f32 %v805, %v853
  %855 = vmatmul.bf16.gmra.mxu0 %v192
  %v856 = vpop.f32.mrf.mxu0
  %v857 = vadd.f32 %v808, %v856
  %v858 = vpop.f32.mrf.mxu0
  %v859 = vadd.f32 %v810, %v858
  %860 = vdwg.mxu0
  %861 = vmatpush.bf16.msra.mxu0 %v540
  %862 = vmatpush.bf16.msra.mxu0 %v539
  %863 = vmatpush.bf16.msra.mxu0 %v538
  %864 = vmatpush.bf16.msra.mxu0 %v537
  %865 = vmatpush.bf16.msra.mxu0 %v536
  %866 = vmatpush.bf16.msra.mxu0 %v535
  %867 = vmatpush.bf16.msra.mxu0 %v534
  %868 = vmatpush.bf16.msra.mxu0 %v533
  %869 = vmatmul.bf16.gmra.mxu0 %v144
  %v870 = vpop.f32.mrf.mxu0
  %v871 = vadd.f32 %v822, %v870
  %v872 = vpop.f32.mrf.mxu0
  %v873 = vadd.f32 %v824, %v872
  %874 = vmatmul.bf16.gmra.mxu0 %v151
  %v875 = vpop.f32.mrf.mxu0
  %v876 = vadd.f32 %v827, %v875
  %v877 = vpop.f32.mrf.mxu0
  %v878 = vadd.f32 %v829, %v877
  %879 = vmatmul.bf16.gmra.mxu0 %v158
  %v880 = vpop.f32.mrf.mxu0
  %v881 = vadd.f32 %v832, %v880
  %v882 = vpop.f32.mrf.mxu0
  %v883 = vadd.f32 %v834, %v882
  %884 = vmatmul.bf16.gmra.mxu0 %v165
  %v885 = vpop.f32.mrf.mxu0
  %v886 = vadd.f32 %v837, %v885
  %v887 = vpop.f32.mrf.mxu0
  %v888 = vadd.f32 %v839, %v887
  %889 = vmatmul.bf16.gmra.mxu0 %v172
  %v890 = vpop.f32.mrf.mxu0
  %v891 = vadd.f32 %v842, %v890
  %v892 = vpop.f32.mrf.mxu0
  %v893 = vadd.f32 %v844, %v892
  %894 = vmatmul.bf16.gmra.mxu0 %v179
  %v895 = vpop.f32.mrf.mxu0
  %v896 = vadd.f32 %v847, %v895
  %v897 = vpop.f32.mrf.mxu0
  %v898 = vadd.f32 %v849, %v897
  %899 = vmatmul.bf16.gmra.mxu0 %v186
  %v900 = vpop.f32.mrf.mxu0
  %v901 = vadd.f32 %v852, %v900
  %v902 = vpop.f32.mrf.mxu0
  %v903 = vadd.f32 %v854, %v902
  %904 = vmatmul.bf16.gmra.mxu0 %v193
  %v905 = vpop.f32.mrf.mxu0
  %v906 = vadd.f32 %v857, %v905
  %v907 = vpop.f32.mrf.mxu0
  %v908 = vadd.f32 %v859, %v907
  %909 = vdwg.mxu0
  %910 = vmatpush.bf16.msra.mxu0 0
  %911 = vmatpush.bf16.msra.mxu0 0
  %912 = vmatpush.bf16.msra.mxu0 0
  %913 = vmatpush.bf16.msra.mxu0 0
  %914 = vmatpush.bf16.msra.mxu0 0
  %915 = vmatpush.bf16.msra.mxu0 0
  %916 = vmatpush.bf16.msra.mxu0 0
  %917 = vmatpush.bf16.msra.mxu0 %v541
  %918 = vmatmul.bf16.gmra.mxu0 %v593
  %v919 = vpop.f32.mrf.mxu0
  %v920 = vadd.f32 %v871, %v919
  %v921 = vpop.f32.mrf.mxu0
  %v922 = vadd.f32 %v873, %v921
  %923 = vmatmul.bf16.gmra.mxu0 %v596
  %v924 = vpop.f32.mrf.mxu0
  %v925 = vadd.f32 %v876, %v924
  %v926 = vpop.f32.mrf.mxu0
  %v927 = vadd.f32 %v878, %v926
  %928 = vmatmul.bf16.gmra.mxu0 %v599
  %v929 = vpop.f32.mrf.mxu0
  %v930 = vadd.f32 %v881, %v929
  %v931 = vpop.f32.mrf.mxu0
  %v932 = vadd.f32 %v883, %v931
  %933 = vmatmul.bf16.gmra.mxu0 %v602
  %v934 = vpop.f32.mrf.mxu0
  %v935 = vadd.f32 %v886, %v934
  %v936 = vpop.f32.mrf.mxu0
  %v937 = vadd.f32 %v888, %v936
  %938 = vmatmul.bf16.gmra.mxu0 %v605
  %v939 = vpop.f32.mrf.mxu0
  %v940 = vadd.f32 %v891, %v939
  %v941 = vpop.f32.mrf.mxu0
  %v942 = vadd.f32 %v893, %v941
  %943 = vmatmul.bf16.gmra.mxu0 %v608
  %v944 = vpop.f32.mrf.mxu0
  %v945 = vadd.f32 %v896, %v944
  %v946 = vpop.f32.mrf.mxu0
  %v947 = vadd.f32 %v898, %v946
  %948 = vmatmul.bf16.gmra.mxu0 %v611
  %v949 = vpop.f32.mrf.mxu0
  %v950 = vadd.f32 %v901, %v949
  %v951 = vpop.f32.mrf.mxu0
  %v952 = vadd.f32 %v903, %v951
  %953 = vmatmul.bf16.gmra.mxu0 %v614
  %v954 = vpop.f32.mrf.mxu0
  %v955 = vadd.f32 %v906, %v954
  %v956 = vpop.f32.mrf.mxu0
  %v957 = vadd.f32 %v908, %v956
  %958 = vdwg.mxu0
  %v959 = vmax.f32 %v920, 0.0
  %v960 = vmax.f32 %v922, 0.0
  %v961 = vmax.f32 %v925, 0.0
  %v962 = vmax.f32 %v927, 0.0
  %v963 = vmax.f32 %v930, 0.0
  %v964 = vmax.f32 %v932, 0.0
  %v965 = vmax.f32 %v935, 0.0
  %v966 = vmax.f32 %v937, 0.0
  %v967 = vmax.f32 %v940, 0.0
  %v968 = vmax.f32 %v942, 0.0
  %v969 = vmax.f32 %v945, 0.0
  %v970 = vmax.f32 %v947, 0.0
  %v971 = vmax.f32 %v950, 0.0
  %v972 = vmax.f32 %v952, 0.0
  %v973 = vmax.f32 %v955, 0.0
  %v974 = vmax.f32 %v957, 0.0
  %v975 = vpack.c.bf16 %v960, %v959
  %v976 = vpack.c.bf16 %v962, %v961
  %v977 = vpack.c.bf16 %v964, %v963
  %v978 = vpack.c.bf16 %v966, %v965
  %v979 = vpack.c.bf16 %v968, %v967
  %v980 = vpack.c.bf16 %v970, %v969
  %v981 = vpack.c.bf16 %v972, %v971
  %v982 = vpack.c.bf16 %v974, %v973
  %v983 = vld [vmem:[%s3] sm:$0xff]
  %v984 = vld [vmem:[%s3 + $0x8] sm:$0xff]
  %v985 = vld [vmem:[%s3 + $0x10] sm:$0xff]
  %v986 = vld [vmem:[%s3 + $0x18] sm:$0xff]
  %v987 = vld [vmem:[%s3 + $0x20] sm:$0xff]
  %v988 = vld [vmem:[%s3 + $0x28] sm:$0xff]
  %v989 = vld [vmem:[%s3 + $0x30] sm:$0xff]
  %v990 = vld [vmem:[%s3 + $0x38] sm:$0xff]
  %v991 = vld [vmem:[%s3 + $0x40] sm:$0xff]
  %v992 = vld [vmem:[%s3 + $0x48] sm:$0xff]
  %v993 = vld [vmem:[%s3 + $0x50] sm:$0xff]
  %v994 = vld [vmem:[%s3 + $0x58] sm:$0xff]
  %v995 = vld [vmem:[%s3 + $0x60] sm:$0xff]
  %v996 = vld [vmem:[%s3 + $0x68] sm:$0xff]
  %v997 = vld [vmem:[%s3 + $0x70] sm:$0xff]
  %v998 = vld [vmem:[%s3 + $0x78] sm:$0xff]
  %v999 = vld [vmem:[%s4] sm:$0x3]
  %v1001 = vperm.slane %v999, 0
  %v1002 = vperm.slane %v999, 1
  %v1021 = vunpack.c.l.b16 %v983
  %v1022 = vunpack.c.h.b16 %v983
  %v1023 = vunpack.c.l.b16 %v984
  %v1024 = vunpack.c.h.b16 %v984
  %v1025 = vunpack.c.l.b16 %v985
  %v1026 = vunpack.c.h.b16 %v985
  %v1027 = vunpack.c.l.b16 %v986
  %v1028 = vunpack.c.h.b16 %v986
  %v1029 = vunpack.c.l.b16 %v987
  %v1030 = vunpack.c.h.b16 %v987
  %v1031 = vunpack.c.l.b16 %v988
  %v1032 = vunpack.c.h.b16 %v988
  %v1033 = vunpack.c.l.b16 %v989
  %v1034 = vunpack.c.h.b16 %v989
  %v1035 = vunpack.c.l.b16 %v990
  %v1036 = vunpack.c.h.b16 %v990
  %v1037 = vunpack.c.l.b16 %v991
  %v1038 = vunpack.c.h.b16 %v991
  %v1039 = vunpack.c.l.b16 %v992
  %v1040 = vunpack.c.h.b16 %v992
  %v1041 = vunpack.c.l.b16 %v993
  %v1042 = vunpack.c.h.b16 %v993
  %v1043 = vunpack.c.l.b16 %v994
  %v1044 = vunpack.c.h.b16 %v994
  %v1045 = vunpack.c.l.b16 %v995
  %v1046 = vunpack.c.h.b16 %v995
  %v1047 = vunpack.c.l.b16 %v996
  %v1048 = vunpack.c.h.b16 %v996
  %v1049 = vunpack.c.l.b16 %v997
  %v1050 = vunpack.c.h.b16 %v997
  %v1051 = vunpack.c.l.b16 %v998
  %v1052 = vunpack.c.h.b16 %v998
  %v1053 = vpack.c.b16 %v1023, %v1021
  %v1054 = vpack.c.b16 %v1024, %v1022
  %v1055 = vpack.c.b16 %v1027, %v1025
  %v1056 = vpack.c.b16 %v1028, %v1026
  %v1057 = vpack.c.b16 %v1031, %v1029
  %v1058 = vpack.c.b16 %v1032, %v1030
  %v1059 = vpack.c.b16 %v1035, %v1033
  %v1060 = vpack.c.b16 %v1036, %v1034
  %v1061 = vpack.c.b16 %v1039, %v1037
  %v1062 = vpack.c.b16 %v1040, %v1038
  %v1063 = vpack.c.b16 %v1043, %v1041
  %v1064 = vpack.c.b16 %v1044, %v1042
  %v1065 = vpack.c.b16 %v1047, %v1045
  %v1066 = vpack.c.b16 %v1048, %v1046
  %v1067 = vpack.c.b16 %v1051, %v1049
  %v1068 = vpack.c.b16 %v1052, %v1050
  %1085 = vmatpush.bf16.msra.mxu0 %v1067
  %1086 = vmatpush.bf16.msra.mxu0 %v1065
  %1087 = vmatpush.bf16.msra.mxu0 %v1063
  %1088 = vmatpush.bf16.msra.mxu0 %v1061
  %1089 = vmatpush.bf16.msra.mxu0 %v1059
  %1090 = vmatpush.bf16.msra.mxu0 %v1057
  %1091 = vmatpush.bf16.msra.mxu0 %v1055
  %1092 = vmatpush.bf16.msra.mxu0 %v1053
  %1093 = vmatmul.bf16.gmra.mxu0 %v975
  %v1094 = vpop.f32.mrf.mxu0
  %v1095 = vadd.f32 %v1001, %v1094
  %v1096 = vpop.f32.mrf.mxu0
  %v1097 = vadd.f32 %v1001, %v1096
  %1098 = vmatmul.bf16.gmra.mxu0 %v976
  %v1099 = vpop.f32.mrf.mxu0
  %v1100 = vadd.f32 %v1001, %v1099
  %v1101 = vpop.f32.mrf.mxu0
  %v1102 = vadd.f32 %v1001, %v1101
  %1103 = vmatmul.bf16.gmra.mxu0 %v977
  %v1104 = vpop.f32.mrf.mxu0
  %v1105 = vadd.f32 %v1001, %v1104
  %v1106 = vpop.f32.mrf.mxu0
  %v1107 = vadd.f32 %v1001, %v1106
  %1108 = vmatmul.bf16.gmra.mxu0 %v978
  %v1109 = vpop.f32.mrf.mxu0
  %v1110 = vadd.f32 %v1001, %v1109
  %v1111 = vpop.f32.mrf.mxu0
  %v1112 = vadd.f32 %v1001, %v1111
  %1113 = vmatmul.bf16.gmra.mxu0 %v979
  %v1114 = vpop.f32.mrf.mxu0
  %v1115 = vadd.f32 %v1001, %v1114
  %v1116 = vpop.f32.mrf.mxu0
  %v1117 = vadd.f32 %v1001, %v1116
  %1118 = vmatmul.bf16.gmra.mxu0 %v980
  %v1119 = vpop.f32.mrf.mxu0
  %v1120 = vadd.f32 %v1001, %v1119
  %v1121 = vpop.f32.mrf.mxu0
  %v1122 = vadd.f32 %v1001, %v1121
  %1123 = vmatmul.bf16.gmra.mxu0 %v981
  %v1124 = vpop.f32.mrf.mxu0
  %v1125 = vadd.f32 %v1001, %v1124
  %v1126 = vpop.f32.mrf.mxu0
  %v1127 = vadd.f32 %v1001, %v1126
  %1128 = vmatmul.bf16.gmra.mxu0 %v982
  %v1129 = vpop.f32.mrf.mxu0
  %v1130 = vadd.f32 %v1001, %v1129
  %v1131 = vpop.f32.mrf.mxu0
  %v1132 = vadd.f32 %v1001, %v1131
  %1133 = vdwg.mxu0
  %1134 = vmatpush.bf16.msra.mxu0 %v1068
  %1135 = vmatpush.bf16.msra.mxu0 %v1066
  %1136 = vmatpush.bf16.msra.mxu0 %v1064
  %1137 = vmatpush.bf16.msra.mxu0 %v1062
  %1138 = vmatpush.bf16.msra.mxu0 %v1060
  %1139 = vmatpush.bf16.msra.mxu0 %v1058
  %1140 = vmatpush.bf16.msra.mxu0 %v1056
  %1141 = vmatpush.bf16.msra.mxu0 %v1054
  %1142 = vmatmul.bf16.gmra.mxu0 %v975
  %v1143 = vpop.f32.mrf.mxu0
  %v1144 = vadd.f32 %v1002, %v1143
  %v1145 = vpop.f32.mrf.mxu0
  %v1146 = vadd.f32 %v1002, %v1145
  %1147 = vmatmul.bf16.gmra.mxu0 %v976
  %v1148 = vpop.f32.mrf.mxu0
  %v1149 = vadd.f32 %v1002, %v1148
  %v1150 = vpop.f32.mrf.mxu0
  %v1151 = vadd.f32 %v1002, %v1150
  %1152 = vmatmul.bf16.gmra.mxu0 %v977
  %v1153 = vpop.f32.mrf.mxu0
  %v1154 = vadd.f32 %v1002, %v1153
  %v1155 = vpop.f32.mrf.mxu0
  %v1156 = vadd.f32 %v1002, %v1155
  %1157 = vmatmul.bf16.gmra.mxu0 %v978
  %v1158 = vpop.f32.mrf.mxu0
  %v1159 = vadd.f32 %v1002, %v1158
  %v1160 = vpop.f32.mrf.mxu0
  %v1161 = vadd.f32 %v1002, %v1160
  %1162 = vmatmul.bf16.gmra.mxu0 %v979
  %v1163 = vpop.f32.mrf.mxu0
  %v1164 = vadd.f32 %v1002, %v1163
  %v1165 = vpop.f32.mrf.mxu0
  %v1166 = vadd.f32 %v1002, %v1165
  %1167 = vmatmul.bf16.gmra.mxu0 %v980
  %v1168 = vpop.f32.mrf.mxu0
  %v1169 = vadd.f32 %v1002, %v1168
  %v1170 = vpop.f32.mrf.mxu0
  %v1171 = vadd.f32 %v1002, %v1170
  %1172 = vmatmul.bf16.gmra.mxu0 %v981
  %v1173 = vpop.f32.mrf.mxu0
  %v1174 = vadd.f32 %v1002, %v1173
  %v1175 = vpop.f32.mrf.mxu0
  %v1176 = vadd.f32 %v1002, %v1175
  %1177 = vmatmul.bf16.gmra.mxu0 %v982
  %v1178 = vpop.f32.mrf.mxu0
  %v1179 = vadd.f32 %v1002, %v1178
  %v1180 = vpop.f32.mrf.mxu0
  %v1181 = vadd.f32 %v1002, %v1180
  %1182 = vdwg.mxu0
  %v1183 = vmax.f32 %v1095, 0.0
  %v1184 = vmax.f32 %v1144, 0.0
  %v1185 = vmax.f32 %v1097, 0.0
  %v1186 = vmax.f32 %v1146, 0.0
  %v1187 = vmax.f32 %v1100, 0.0
  %v1188 = vmax.f32 %v1149, 0.0
  %v1189 = vmax.f32 %v1102, 0.0
  %v1190 = vmax.f32 %v1151, 0.0
  %v1191 = vmax.f32 %v1105, 0.0
  %v1192 = vmax.f32 %v1154, 0.0
  %v1193 = vmax.f32 %v1107, 0.0
  %v1194 = vmax.f32 %v1156, 0.0
  %v1195 = vmax.f32 %v1110, 0.0
  %v1196 = vmax.f32 %v1159, 0.0
  %v1197 = vmax.f32 %v1112, 0.0
  %v1198 = vmax.f32 %v1161, 0.0
  %v1199 = vmax.f32 %v1115, 0.0
  %v1200 = vmax.f32 %v1164, 0.0
  %v1201 = vmax.f32 %v1117, 0.0
  %v1202 = vmax.f32 %v1166, 0.0
  %v1203 = vmax.f32 %v1120, 0.0
  %v1204 = vmax.f32 %v1169, 0.0
  %v1205 = vmax.f32 %v1122, 0.0
  %v1206 = vmax.f32 %v1171, 0.0
  %v1207 = vmax.f32 %v1125, 0.0
  %v1208 = vmax.f32 %v1174, 0.0
  %v1209 = vmax.f32 %v1127, 0.0
  %v1210 = vmax.f32 %v1176, 0.0
  %v1211 = vmax.f32 %v1130, 0.0
  %v1212 = vmax.f32 %v1179, 0.0
  %v1213 = vmax.f32 %v1132, 0.0
  %v1214 = vmax.f32 %v1181, 0.0
  %v1215 = vpack.c.bf16 %v1185, %v1183
  %v1216 = vpack.c.bf16 %v1186, %v1184
  %v1217 = vpack.c.bf16 %v1189, %v1187
  %v1218 = vpack.c.bf16 %v1190, %v1188
  %v1219 = vpack.c.bf16 %v1193, %v1191
  %v1220 = vpack.c.bf16 %v1194, %v1192
  %v1221 = vpack.c.bf16 %v1197, %v1195
  %v1222 = vpack.c.bf16 %v1198, %v1196
  %v1223 = vpack.c.bf16 %v1201, %v1199
  %v1224 = vpack.c.bf16 %v1202, %v1200
  %v1225 = vpack.c.bf16 %v1205, %v1203
  %v1226 = vpack.c.bf16 %v1206, %v1204
  %v1227 = vpack.c.bf16 %v1209, %v1207
  %v1228 = vpack.c.bf16 %v1210, %v1208
  %v1229 = vpack.c.bf16 %v1213, %v1211
  %v1230 = vpack.c.bf16 %v1214, %v1212
  %v1231 = vld [vmem:[%s5] sm:$0xf]
  %v1232 = vld [vmem:[%s5 + $0x4] sm:$0xf]
  %v1233 = vld [vmem:[%s5 + $0x8] sm:$0xf]
  %v1234 = vld [vmem:[%s5 + $0xc] sm:$0xf]
  %v1235 = vld [vmem:[%s5 + $0x10] sm:$0xf]
  %v1236 = vld [vmem:[%s5 + $0x14] sm:$0xf]
  %v1237 = vld [vmem:[%s5 + $0x18] sm:$0xf]
  %v1238 = vld [vmem:[%s5 + $0x1c] sm:$0xf]
  %v1239 = vld [vmem:[%s5 + $0x20] sm:$0xf]
  %v1240 = vld [vmem:[%s5 + $0x24] sm:$0xf]
  %v1241 = vld [vmem:[%s5 + $0x28] sm:$0xf]
  %v1242 = vld [vmem:[%s5 + $0x2c] sm:$0xf]
  %v1243 = vld [vmem:[%s5 + $0x30] sm:$0xf]
  %v1244 = vld [vmem:[%s5 + $0x34] sm:$0xf]
  %v1245 = vld [vmem:[%s5 + $0x38] sm:$0xf]
  %v1246 = vld [vmem:[%s5 + $0x3c] sm:$0xf]
  %v1247 = vld [vmem:[%s5 + $0x40] sm:$0xf]
  %v1248 = vld [vmem:[%s5 + $0x44] sm:$0xf]
  %v1249 = vld [vmem:[%s5 + $0x48] sm:$0xf]
  %v1250 = vld [vmem:[%s5 + $0x4c] sm:$0xf]
  %v1251 = vld [vmem:[%s5 + $0x50] sm:$0xf]
  %v1252 = vld [vmem:[%s5 + $0x54] sm:$0xf]
  %v1253 = vld [vmem:[%s5 + $0x58] sm:$0xf]
  %v1254 = vld [vmem:[%s5 + $0x5c] sm:$0xf]
  %v1255 = vld [vmem:[%s5 + $0x60] sm:$0xf]
  %v1256 = vld [vmem:[%s5 + $0x64] sm:$0xf]
  %v1257 = vld [vmem:[%s5 + $0x68] sm:$0xf]
  %v1258 = vld [vmem:[%s5 + $0x6c] sm:$0xf]
  %v1259 = vld [vmem:[%s5 + $0x70] sm:$0xf]
  %v1260 = vld [vmem:[%s5 + $0x74] sm:$0xf]
  %v1261 = vld [vmem:[%s5 + $0x78] sm:$0xf]
  %v1262 = vld [vmem:[%s5 + $0x7c] sm:$0xf]
  %v1263 = vld [vmem:[%s6] sm:$0x1]
  %v1265 = vperm.slane %v1263, 0
  %v1299 = vunpack.c.l.b16 %v1231
  %v1300 = vunpack.c.l.b16 %v1232
  %v1301 = vunpack.c.l.b16 %v1233
  %v1302 = vunpack.c.l.b16 %v1234
  %v1303 = vunpack.c.l.b16 %v1235
  %v1304 = vunpack.c.l.b16 %v1236
  %v1305 = vunpack.c.l.b16 %v1237
  %v1306 = vunpack.c.l.b16 %v1238
  %v1307 = vunpack.c.l.b16 %v1239
  %v1308 = vunpack.c.l.b16 %v1240
  %v1309 = vunpack.c.l.b16 %v1241
  %v1310 = vunpack.c.l.b16 %v1242
  %v1311 = vunpack.c.l.b16 %v1243
  %v1312 = vunpack.c.l.b16 %v1244
  %v1313 = vunpack.c.l.b16 %v1245
  %v1314 = vunpack.c.l.b16 %v1246
  %v1315 = vunpack.c.l.b16 %v1247
  %v1316 = vunpack.c.l.b16 %v1248
  %v1317 = vunpack.c.l.b16 %v1249
  %v1318 = vunpack.c.l.b16 %v1250
  %v1319 = vunpack.c.l.b16 %v1251
  %v1320 = vunpack.c.l.b16 %v1252
  %v1321 = vunpack.c.l.b16 %v1253
  %v1322 = vunpack.c.l.b16 %v1254
  %v1323 = vunpack.c.l.b16 %v1255
  %v1324 = vunpack.c.l.b16 %v1256
  %v1325 = vunpack.c.l.b16 %v1257
  %v1326 = vunpack.c.l.b16 %v1258
  %v1327 = vunpack.c.l.b16 %v1259
  %v1328 = vunpack.c.l.b16 %v1260
  %v1329 = vunpack.c.l.b16 %v1261
  %v1330 = vunpack.c.l.b16 %v1262
  %v1331 = vpack.c.b16 %v1300, %v1299
  %v1332 = vpack.c.b16 %v1302, %v1301
  %v1333 = vpack.c.b16 %v1304, %v1303
  %v1334 = vpack.c.b16 %v1306, %v1305
  %v1335 = vpack.c.b16 %v1308, %v1307
  %v1336 = vpack.c.b16 %v1310, %v1309
  %v1337 = vpack.c.b16 %v1312, %v1311
  %v1338 = vpack.c.b16 %v1314, %v1313
  %v1339 = vpack.c.b16 %v1316, %v1315
  %v1340 = vpack.c.b16 %v1318, %v1317
  %v1341 = vpack.c.b16 %v1320, %v1319
  %v1342 = vpack.c.b16 %v1322, %v1321
  %v1343 = vpack.c.b16 %v1324, %v1323
  %v1344 = vpack.c.b16 %v1326, %v1325
  %v1345 = vpack.c.b16 %v1328, %v1327
  %v1346 = vpack.c.b16 %v1330, %v1329
  %1363 = vmatpush.bf16.msra.mxu0 %v1338
  %1364 = vmatpush.bf16.msra.mxu0 %v1337
  %1365 = vmatpush.bf16.msra.mxu0 %v1336
  %1366 = vmatpush.bf16.msra.mxu0 %v1335
  %1367 = vmatpush.bf16.msra.mxu0 %v1334
  %1368 = vmatpush.bf16.msra.mxu0 %v1333
  %1369 = vmatpush.bf16.msra.mxu0 %v1332
  %1370 = vmatpush.bf16.msra.mxu0 %v1331
  %1371 = vmatmul.bf16.gmra.mxu0 %v1215
  %v1372 = vpop.f32.mrf.mxu0
  %v1373 = vadd.f32 %v1265, %v1372
  %v1374 = vpop.f32.mrf.mxu0
  %v1375 = vadd.f32 %v1265, %v1374
  %1376 = vmatmul.bf16.gmra.mxu0 %v1217
  %v1377 = vpop.f32.mrf.mxu0
  %v1378 = vadd.f32 %v1265, %v1377
  %v1379 = vpop.f32.mrf.mxu0
  %v1380 = vadd.f32 %v1265, %v1379
  %1381 = vmatmul.bf16.gmra.mxu0 %v1219
  %v1382 = vpop.f32.mrf.mxu0
  %v1383 = vadd.f32 %v1265, %v1382
  %v1384 = vpop.f32.mrf.mxu0
  %v1385 = vadd.f32 %v1265, %v1384
  %1386 = vmatmul.bf16.gmra.mxu0 %v1221
  %v1387 = vpop.f32.mrf.mxu0
  %v1388 = vadd.f32 %v1265, %v1387
  %v1389 = vpop.f32.mrf.mxu0
  %v1390 = vadd.f32 %v1265, %v1389
  %1391 = vmatmul.bf16.gmra.mxu0 %v1223
  %v1392 = vpop.f32.mrf.mxu0
  %v1393 = vadd.f32 %v1265, %v1392
  %v1394 = vpop.f32.mrf.mxu0
  %v1395 = vadd.f32 %v1265, %v1394
  %1396 = vmatmul.bf16.gmra.mxu0 %v1225
  %v1397 = vpop.f32.mrf.mxu0
  %v1398 = vadd.f32 %v1265, %v1397
  %v1399 = vpop.f32.mrf.mxu0
  %v1400 = vadd.f32 %v1265, %v1399
  %1401 = vmatmul.bf16.gmra.mxu0 %v1227
  %v1402 = vpop.f32.mrf.mxu0
  %v1403 = vadd.f32 %v1265, %v1402
  %v1404 = vpop.f32.mrf.mxu0
  %v1405 = vadd.f32 %v1265, %v1404
  %1406 = vmatmul.bf16.gmra.mxu0 %v1229
  %v1407 = vpop.f32.mrf.mxu0
  %v1408 = vadd.f32 %v1265, %v1407
  %v1409 = vpop.f32.mrf.mxu0
  %v1410 = vadd.f32 %v1265, %v1409
  %1411 = vdwg.mxu0
  %1412 = vmatpush.bf16.msra.mxu0 %v1346
  %1413 = vmatpush.bf16.msra.mxu0 %v1345
  %1414 = vmatpush.bf16.msra.mxu0 %v1344
  %1415 = vmatpush.bf16.msra.mxu0 %v1343
  %1416 = vmatpush.bf16.msra.mxu0 %v1342
  %1417 = vmatpush.bf16.msra.mxu0 %v1341
  %1418 = vmatpush.bf16.msra.mxu0 %v1340
  %1419 = vmatpush.bf16.msra.mxu0 %v1339
  %1420 = vmatmul.bf16.gmra.mxu0 %v1216
  %v1421 = vpop.f32.mrf.mxu0
  %v1422 = vadd.f32 %v1373, %v1421
  %v1423 = vpop.f32.mrf.mxu0
  %v1424 = vadd.f32 %v1375, %v1423
  %1425 = vmatmul.bf16.gmra.mxu0 %v1218
  %v1426 = vpop.f32.mrf.mxu0
  %v1427 = vadd.f32 %v1378, %v1426
  %v1428 = vpop.f32.mrf.mxu0
  %v1429 = vadd.f32 %v1380, %v1428
  %1430 = vmatmul.bf16.gmra.mxu0 %v1220
  %v1431 = vpop.f32.mrf.mxu0
  %v1432 = vadd.f32 %v1383, %v1431
  %v1433 = vpop.f32.mrf.mxu0
  %v1434 = vadd.f32 %v1385, %v1433
  %1435 = vmatmul.bf16.gmra.mxu0 %v1222
  %v1436 = vpop.f32.mrf.mxu0
  %v1437 = vadd.f32 %v1388, %v1436
  %v1438 = vpop.f32.mrf.mxu0
  %v1439 = vadd.f32 %v1390, %v1438
  %1440 = vmatmul.bf16.gmra.mxu0 %v1224
  %v1441 = vpop.f32.mrf.mxu0
  %v1442 = vadd.f32 %v1393, %v1441
  %v1443 = vpop.f32.mrf.mxu0
  %v1444 = vadd.f32 %v1395, %v1443
  %1445 = vmatmul.bf16.gmra.mxu0 %v1226
  %v1446 = vpop.f32.mrf.mxu0
  %v1447 = vadd.f32 %v1398, %v1446
  %v1448 = vpop.f32.mrf.mxu0
  %v1449 = vadd.f32 %v1400, %v1448
  %1450 = vmatmul.bf16.gmra.mxu0 %v1228
  %v1451 = vpop.f32.mrf.mxu0
  %v1452 = vadd.f32 %v1403, %v1451
  %v1453 = vpop.f32.mrf.mxu0
  %v1454 = vadd.f32 %v1405, %v1453
  %1455 = vmatmul.bf16.gmra.mxu0 %v1230
  %v1456 = vpop.f32.mrf.mxu0
  %v1457 = vadd.f32 %v1408, %v1456
  %v1458 = vpop.f32.mrf.mxu0
  %v1459 = vadd.f32 %v1410, %v1458
  %1460 = vdwg.mxu0
  %1461 = vst [vmem:[%s7] sm:$0xff] %v1422
  %1462 = vst [vmem:[%s7 + $0x8] sm:$0xff] %v1424
  %1463 = vst [vmem:[%s7 + $0x10] sm:$0xff] %v1427
  %1464 = vst [vmem:[%s7 + $0x18] sm:$0xff] %v1429
  %1465 = vst [vmem:[%s7 + $0x20] sm:$0xff] %v1432
  %1466 = vst [vmem:[%s7 + $0x28] sm:$0xff] %v1434
  %1467 = vst [vmem:[%s7 + $0x30] sm:$0xff] %v1437
  %1468 = vst [vmem:[%s7 + $0x38] sm:$0xff] %v1439
  %1469 = vst [vmem:[%s7 + $0x40] sm:$0xff] %v1442
  %1470 = vst [vmem:[%s7 + $0x48] sm:$0xff] %v1444
  %1471 = vst [vmem:[%s7 + $0x50] sm:$0xff] %v1447
  %1472 = vst [vmem:[%s7 + $0x58] sm:$0xff] %v1449
  %1473 = vst [vmem:[%s7 + $0x60] sm:$0xff] %v1452
  %1474 = vst [vmem:[%s7 + $0x68] sm:$0xff] %v1454
  %1475 = vst [vmem:[%s7 + $0x70] sm:$0xff] %v1457
  %1476 = vst [vmem:[%s7 + $0x78] sm:$0xff] %v1459
  // Predicated region
  $region30: #{mnist_classifier_forward.1} parent=0 // pred_check
    _
  $region31: #{mnist_classifier_forward.1} parent=0 // pred_check_branch
    %1478 = sbr.rel (0) target = $region33
  $region32: #{mnist_classifier_forward.1} parent=0 // pred_region
    _
  $region33: #{mnist_classifier_forward.1} parent=0 // pred_fallthru
    _
  // Predicated region
  $region34: #{mnist_classifier_forward.1} parent=0 // pred_check
    _
  $region35: #{mnist_classifier_forward.1} parent=0 // pred_check_branch
    %1480 = sbr.rel (0) target = $region37
  $region36: #{mnist_classifier_forward.1} parent=0 // pred_region
    _
  $region37: #{mnist_classifier_forward.1} parent=0 // pred_fallthru
    _

</llo_original>
